<compile_context>
chip_gen: v6e
topology: v6e:2x2x1
jax: 0.10.0
libtpu: 0.0.40
codegen_flags: <defaults>
</compile_context>

<pallas_src>
import jax
import jax.numpy as jnp
from jax.experimental import pallas as pl
from jax.experimental.pallas import tpu as pltpu


def _attention_pooling_kernel(h_ref, wt_ref, wb_ref, v_ref, vb_ref, out_ref,
                              m_sc, l_sc, acc_sc):
    s_idx = pl.program_id(1)

    # --- init running-softmax state at the first sequence tile of each batch block
    @pl.when(s_idx == 0)
    def _():
        m_sc[...] = jnp.full(m_sc.shape, -jnp.inf, dtype=m_sc.dtype)
        l_sc[...] = jnp.zeros(l_sc.shape, dtype=l_sc.dtype)
        acc_sc[...] = jnp.zeros(acc_sc.shape, dtype=acc_sc.dtype)

    h = h_ref[...]                                   # (Bt, St, H), native dtype
    bt, st, hd = h.shape

    # --- Linear w on the MXU: t = tanh(h @ W^T + b_w); W^T pre-transposed host-side.
    # Collapsing (Bt, St) is layout-cheap (St is a multiple of 8 or the full S).
    h2 = h.reshape(bt * st, hd)
    t = jnp.tanh(
        jnp.dot(h2, wt_ref[...], preferred_element_type=jnp.float32)
        + wb_ref[...].astype(jnp.float32)            # (1, H) broadcast
    ).reshape(bt, st, hd)                            # f32

    # --- Linear v as VPU multiply + lane reduce (replaces the (., H) x (H, 1) matmul).
    v_row = v_ref[...].astype(jnp.float32)           # (1, H)
    raw = jnp.sum(t * v_row[None], axis=-1) + vb_ref[0]     # (Bt, St)

    # --- online softmax over sequence tiles
    m_prev = m_sc[...]                                       # (Bt, 1)
    m_new = jnp.maximum(m_prev, jnp.max(raw, axis=-1, keepdims=True))
    alpha = jnp.exp(m_prev - m_new)                          # (Bt, 1)
    p = jnp.exp(raw - m_new)                                 # (Bt, St)
    l_sc[...] = alpha * l_sc[...] + jnp.sum(p, axis=-1, keepdims=True)

    # --- weighted sum of the raw h tile over this sequence chunk
    if st >= 128:
        # Large S tiles: route the contraction through the (otherwise idle) MXU.
        p_b = p.reshape(bt, 1, st).astype(h.dtype)
        upd = jnp.einsum("bqs,bsh->bqh", p_b, h,
                         preferred_element_type=jnp.float32).reshape(bt, hd)
    else:
        # Small S tiles: broadcast-mul + sublane reduce on the VPU/XLU.
        upd = jnp.sum(h.astype(jnp.float32) * p[:, :, None], axis=1)
    acc_sc[...] = alpha * acc_sc[...] + upd
    m_sc[...] = m_new

    # --- finalize on the last sequence tile
    @pl.when(s_idx == pl.num_programs(1) - 1)
    def _():
        # approx=False keeps tight numeric tolerance; approx=True (EUP) is a
        # valid perf option when ~1e-3 relative error is acceptable.
        inv_l = pl.reciprocal(l_sc[...], approx=False)
        out_ref[...] = (acc_sc[...] * inv_l).astype(out_ref.dtype)


def _pick_batch_tile(B):
    # Output block is (Bt, H): Bt must be a multiple of 8 or equal to B.
    if B > 8 and B % 8 == 0:
        return 8
    return B


def _pick_seq_tile(S, bt, H, itemsize, budget_bytes=8 << 20):
    # h block is (Bt, St, H): St must be a multiple of 8 or equal to S.
    if S % 8 != 0:
        return S
    per_st = 2 * bt * H * itemsize  # double-buffered h rows per sequence element
    best = None
    for st in range(8, S + 1, 8):
        if S % st == 0 and st * per_st <= budget_bytes:
            best = st               # largest divisor that fits the budget
    return best if best is not None else 8


def attention_pooling(h, attention_mask, w_weight, w_bias, v_weight, v_bias,
                      *, block_b=None, block_s=None):
    """h: (B, S, H). attention_mask is ignored (as in the reference forward)."""
    del attention_mask  # unused by the reference forward pass
    B, S, H = h.shape
    itemsize = jnp.dtype(h.dtype).itemsize

    bt = block_b if block_b is not None else _pick_batch_tile(B)
    st = block_s if block_s is not None else _pick_seq_tile(S, bt, H, itemsize)
    assert B % bt == 0 and S % st == 0, (B, S, bt, st)

    # Host-side prep: transpose W once; reshape biases.
    wt = jnp.asarray(w_weight).T                     # (H, H) = W^T
    wb = jnp.asarray(w_bias).reshape(1, H)
    v_row = jnp.asarray(v_weight).reshape(1, H)
    vb = jnp.asarray(v_bias).reshape(1).astype(jnp.float32)   # scalar -> SMEM

    grid = (B // bt, S // st)

    # Explicit VMEM budget: double-buffered h tile + resident weights + out + scratch.
    needed = (2 * bt * st * H * itemsize
              + 2 * (H * H + 2 * H) * jnp.dtype(wt.dtype).itemsize
              + 2 * bt * H * itemsize
              + (bt * H + 2 * bt) * 4)
    vmem_limit = int(min(max(needed + (4 << 20), 16 << 20), 64 << 20))

    grid_spec = pltpu.PrefetchScalarGridSpec(
        num_scalar_prefetch=0,
        grid=grid,
        in_specs=[
            pl.BlockSpec((bt, st, H), lambda b, s: (b, s, 0)),     # h tiles (pipelined)
            pl.BlockSpec((H, H), lambda b, s: (0, 0)),             # W^T, resident
            pl.BlockSpec((1, H), lambda b, s: (0, 0)),             # b_w, resident
            pl.BlockSpec((1, H), lambda b, s: (0, 0)),             # v row, resident
            pl.BlockSpec(memory_space=pltpu.MemorySpace.SMEM),     # v bias scalar
        ],
        out_specs=pl.BlockSpec((bt, H), lambda b, s: (b, 0)),      # revisited across s
        scratch_shapes=[
            pltpu.VMEM((bt, 1), jnp.float32),   # running max  m
            pltpu.VMEM((bt, 1), jnp.float32),   # running sum  l
            pltpu.VMEM((bt, H), jnp.float32),   # accumulator  acc
        ],
    )

    return pl.pallas_call(
        _attention_pooling_kernel,
        out_shape=jax.ShapeDtypeStruct((B, H), h.dtype),
        grid_spec=grid_spec,
        compiler_params=pltpu.CompilerParams(
            dimension_semantics=("parallel", "arbitrary"),
            vmem_limit_bytes=vmem_limit,
        ),
    )(h, wt, wb, v_row, vb)


def _reference(h, w_weight, w_bias, v_weight, v_bias):
    t = jnp.tanh(h @ w_weight.T + w_bias)
    raw = (t @ v_weight.T + v_bias)[..., 0]
    weights = jax.nn.softmax(raw, axis=1)
    return jnp.sum(h * weights[..., None], axis=1)


if __name__ == "__main__":
    B, S, H = 2, 16, 32  # batch, seq, hidden_dim

    key = jax.random.PRNGKey(0)
    k_h, k_w, k_wb, k_v, k_vb = jax.random.split(key, 5)

    h = jax.random.normal(k_h, (B, S, H), dtype=jnp.float32)
    attention_mask = jnp.ones((B, S), dtype=jnp.float32)  # unused, mirrors API

    # Deterministic parameter init (shapes match nn.Linear(H, H) / nn.Linear(H, 1))
    w_weight = jax.random.normal(k_w, (H, H), dtype=jnp.float32) * 0.1
    w_bias = jax.random.normal(k_wb, (H,), dtype=jnp.float32) * 0.1
    v_weight = jax.random.normal(k_v, (1, H), dtype=jnp.float32) * 0.1
    v_bias = jax.random.normal(k_vb, (1,), dtype=jnp.float32) * 0.1

    ref = _reference(h, w_weight, w_bias, v_weight, v_bias)

    # 1) default (budget-driven) tiling — single sequence tile at this size.
    out = attention_pooling(h, attention_mask, w_weight, w_bias, v_weight, v_bias)
    out = jax.block_until_ready(out)
    assert out.shape == (B, H), out.shape
    assert jnp.allclose(out, ref, atol=1e-5, rtol=1e-5), "mismatch vs reference"

    # 2) explicit sequence tiling — exercises the multi-tile online-softmax path.
    out_tiled = attention_pooling(h, attention_mask, w_weight, w_bias,
                                  v_weight, v_bias, block_s=8)
    out_tiled = jax.block_until_ready(out_tiled)
    assert jnp.allclose(out_tiled, ref, atol=1e-5, rtol=1e-5), "tiled mismatch"

    print("KERNEL_OK")
</pallas_src>

<mosaic_0001>
module attributes {stable_mosaic.version = 11 : i64} {
  func.func @_attention_pooling_kernel(%arg0: i32, %arg1: i32, %arg2: memref<2x16x32xf32, #tpu.memory_space<vmem>>, %arg3: memref<32x32xf32, #tpu.memory_space<vmem>>, %arg4: memref<1x32xf32, #tpu.memory_space<vmem>>, %arg5: memref<1x32xf32, #tpu.memory_space<vmem>>, %arg6: memref<1xf32, #tpu.memory_space<smem>>, %arg7: memref<2x32xf32, #tpu.memory_space<vmem>>, %arg8: memref<2x1xf32, #tpu.memory_space<vmem>>, %arg9: memref<2x1xf32, #tpu.memory_space<vmem>>, %arg10: memref<2x32xf32, #tpu.memory_space<vmem>>) attributes {dimension_semantics = [#tpu.dimension_semantics<parallel>, #tpu.dimension_semantics<arbitrary>], iteration_bounds = array<i64: 1, 1>, scalar_prefetch = 0 : i64, scratch_operands = 3 : i64, tpu.core_type = #tpu.core_type<tc>, window_params = [{transform_indices = @transform_0, window_bounds = array<i64: 2, 16, 32>}, {pipeline_mode = #tpu.pipeline_mode<synchronous>, transform_indices = @transform_1, window_bounds = array<i64: 32, 32>}, {pipeline_mode = #tpu.pipeline_mode<synchronous>, transform_indices = @transform_2, window_bounds = array<i64: 1, 32>}, {pipeline_mode = #tpu.pipeline_mode<synchronous>, transform_indices = @transform_3, window_bounds = array<i64: 1, 32>}, {transform_indices = @transform_4, window_bounds = array<i64: 1>}, {transform_indices = @transform_5, window_bounds = array<i64: 2, 32>}]} {
    %c0_i32 = arith.constant 0 : i32
    %0 = arith.cmpi eq, %arg1, %c0_i32 : i32
    %1 = arith.extui %0 : i1 to i32
    %c0_i32_0 = arith.constant 0 : i32
    %2 = arith.cmpi ne, %1, %c0_i32_0 : i32
    scf.if %2 {
      %cst_28 = arith.constant 0xFF800000 : f32
      %48 = vector.broadcast %cst_28 : f32 to vector<2x1xf32>
      %c0_29 = arith.constant 0 : index
      %c0_30 = arith.constant 0 : index
      %49 = vector.load %arg8[%c0_29, %c0_30] : memref<2x1xf32, #tpu.memory_space<vmem>>, vector<2x1xf32>
      tpu.vector_store %arg8[%c0_29, %c0_30], %48 {strides = array<i32>} : memref<2x1xf32, #tpu.memory_space<vmem>>, vector<2x1xf32>,
      %cst_31 = arith.constant 0.000000e+00 : f32
      %50 = vector.broadcast %cst_31 : f32 to vector<2x1xf32>
      %c0_32 = arith.constant 0 : index
      %c0_33 = arith.constant 0 : index
      %51 = vector.load %arg9[%c0_32, %c0_33] : memref<2x1xf32, #tpu.memory_space<vmem>>, vector<2x1xf32>
      tpu.vector_store %arg9[%c0_32, %c0_33], %50 {strides = array<i32>} : memref<2x1xf32, #tpu.memory_space<vmem>>, vector<2x1xf32>,
      %cst_34 = arith.constant 0.000000e+00 : f32
      %52 = vector.broadcast %cst_34 : f32 to vector<2x32xf32>
      %c0_35 = arith.constant 0 : index
      %c0_36 = arith.constant 0 : index
      %53 = vector.load %arg10[%c0_35, %c0_36] : memref<2x32xf32, #tpu.memory_space<vmem>>, vector<2x32xf32>
      tpu.vector_store %arg10[%c0_35, %c0_36], %52 {strides = array<i32>} : memref<2x32xf32, #tpu.memory_space<vmem>>, vector<2x32xf32>,
    } else {
    }
    %c0 = arith.constant 0 : index
    %c0_1 = arith.constant 0 : index
    %c0_2 = arith.constant 0 : index
    %3 = vector.load %arg2[%c0, %c0_1, %c0_2] : memref<2x16x32xf32, #tpu.memory_space<vmem>>, vector<2x16x32xf32>
    %4 = vector.shape_cast %3 : vector<2x16x32xf32> to vector<32x32xf32>
    %c0_3 = arith.constant 0 : index
    %c0_4 = arith.constant 0 : index
    %5 = vector.load %arg3[%c0_3, %c0_4] : memref<32x32xf32, #tpu.memory_space<vmem>>, vector<32x32xf32>
    %cst = arith.constant dense<0.000000e+00> : vector<32x32xf32>
    %6 = tpu.matmul %4, %5, %cst {dimension_numbers = #tpu.dot_dimension_numbers<[1], [0], [0], [1], [0, 0, 1, 1], [], []>} : vector<32x32xf32>, vector<32x32xf32>, vector<32x32xf32> -> vector<32x32xf32>
    %c0_5 = arith.constant 0 : index
    %c0_6 = arith.constant 0 : index
    %7 = vector.load %arg4[%c0_5, %c0_6] : memref<1x32xf32, #tpu.memory_space<vmem>>, vector<1x32xf32>
    %8 = vector.broadcast %7 : vector<1x32xf32> to vector<32x32xf32>
    %9 = arith.addf %6, %8 : vector<32x32xf32>
    %10 = math.tanh %9 : vector<32x32xf32>
    %11 = vector.shape_cast %10 : vector<32x32xf32> to vector<2x16x32xf32>
    %c0_7 = arith.constant 0 : index
    %c0_8 = arith.constant 0 : index
    %12 = vector.load %arg5[%c0_7, %c0_8] : memref<1x32xf32, #tpu.memory_space<vmem>>, vector<1x32xf32>
    %13 = vector.shape_cast %12 : vector<1x32xf32> to vector<1x1x32xf32>
    %14 = vector.broadcast %13 : vector<1x1x32xf32> to vector<2x16x32xf32>
    %15 = arith.mulf %11, %14 : vector<2x16x32xf32>
    %cst_9 = arith.constant dense<0.000000e+00> : vector<2x16xf32>
    %16 = vector.multi_reduction <add>, %15, %cst_9 [2] : vector<2x16x32xf32> to vector<2x16xf32>
    %c0_10 = arith.constant 0 : index
    %17 = memref.load %arg6[%c0_10] : memref<1xf32, #tpu.memory_space<smem>>
    %18 = vector.broadcast %17 : f32 to vector<2x16xf32>
    %19 = arith.addf %16, %18 : vector<2x16xf32>
    %c0_11 = arith.constant 0 : index
    %c0_12 = arith.constant 0 : index
    %20 = vector.load %arg8[%c0_11, %c0_12] : memref<2x1xf32, #tpu.memory_space<vmem>>, vector<2x1xf32>
    %cst_13 = arith.constant dense<0xFF800000> : vector<2xf32>
    %21 = vector.multi_reduction <maximumf>, %19, %cst_13 [1] : vector<2x16xf32> to vector<2xf32>
    %22 = vector.shape_cast %21 : vector<2xf32> to vector<2x1xf32>
    %23 = arith.maximumf %20, %22 : vector<2x1xf32>
    %24 = arith.subf %20, %23 : vector<2x1xf32>
    %25 = math.exp %24 : vector<2x1xf32>
    %26 = vector.broadcast %23 : vector<2x1xf32> to vector<2x16xf32>
    %27 = arith.subf %19, %26 : vector<2x16xf32>
    %28 = math.exp %27 : vector<2x16xf32>
    %c0_14 = arith.constant 0 : index
    %c0_15 = arith.constant 0 : index
    %29 = vector.load %arg9[%c0_14, %c0_15] : memref<2x1xf32, #tpu.memory_space<vmem>>, vector<2x1xf32>
    %30 = arith.mulf %25, %29 : vector<2x1xf32>
    %cst_16 = arith.constant dense<0.000000e+00> : vector<2xf32>
    %31 = vector.multi_reduction <add>, %28, %cst_16 [1] : vector<2x16xf32> to vector<2xf32>
    %32 = vector.shape_cast %31 : vector<2xf32> to vector<2x1xf32>
    %33 = arith.addf %30, %32 : vector<2x1xf32>
    %c0_17 = arith.constant 0 : index
    %c0_18 = arith.constant 0 : index
    %34 = vector.load %arg9[%c0_17, %c0_18] : memref<2x1xf32, #tpu.memory_space<vmem>>, vector<2x1xf32>
    tpu.vector_store %arg9[%c0_17, %c0_18], %33 {strides = array<i32>} : memref<2x1xf32, #tpu.memory_space<vmem>>, vector<2x1xf32>,
    %35 = vector.shape_cast %28 : vector<2x16xf32> to vector<2x16x1xf32>
    %36 = vector.broadcast %35 : vector<2x16x1xf32> to vector<2x16x32xf32>
    %37 = arith.mulf %3, %36 : vector<2x16x32xf32>
    %cst_19 = arith.constant dense<0.000000e+00> : vector<2x32xf32>
    %38 = vector.multi_reduction <add>, %37, %cst_19 [1] : vector<2x16x32xf32> to vector<2x32xf32>
    %c0_20 = arith.constant 0 : index
    %c0_21 = arith.constant 0 : index
    %39 = vector.load %arg10[%c0_20, %c0_21] : memref<2x32xf32, #tpu.memory_space<vmem>>, vector<2x32xf32>
    %40 = vector.broadcast %25 : vector<2x1xf32> to vector<2x32xf32>
    %41 = arith.mulf %40, %39 : vector<2x32xf32>
    %42 = arith.addf %41, %38 : vector<2x32xf32>
    %c0_22 = arith.constant 0 : index
    %c0_23 = arith.constant 0 : index
    %43 = vector.load %arg10[%c0_22, %c0_23] : memref<2x32xf32, #tpu.memory_space<vmem>>, vector<2x32xf32>
    tpu.vector_store %arg10[%c0_22, %c0_23], %42 {strides = array<i32>} : memref<2x32xf32, #tpu.memory_space<vmem>>, vector<2x32xf32>,
    %c0_24 = arith.constant 0 : index
    %c0_25 = arith.constant 0 : index
    %44 = vector.load %arg8[%c0_24, %c0_25] : memref<2x1xf32, #tpu.memory_space<vmem>>, vector<2x1xf32>
    tpu.vector_store %arg8[%c0_24, %c0_25], %23 {strides = array<i32>} : memref<2x1xf32, #tpu.memory_space<vmem>>, vector<2x1xf32>,
    %c0_i32_26 = arith.constant 0 : i32
    %45 = arith.cmpi eq, %arg1, %c0_i32_26 : i32
    %46 = arith.extui %45 : i1 to i32
    %c0_i32_27 = arith.constant 0 : i32
    %47 = arith.cmpi ne, %46, %c0_i32_27 : i32
    scf.if %47 {
      %c0_28 = arith.constant 0 : index
      %c0_29 = arith.constant 0 : index
      %48 = vector.load %arg9[%c0_28, %c0_29] : memref<2x1xf32, #tpu.memory_space<vmem>>, vector<2x1xf32>
      %49 = tpu.reciprocal %48 : vector<2x1xf32> -> vector<2x1xf32>
      %c0_30 = arith.constant 0 : index
      %c0_31 = arith.constant 0 : index
      %50 = vector.load %arg10[%c0_30, %c0_31] : memref<2x32xf32, #tpu.memory_space<vmem>>, vector<2x32xf32>
      %51 = vector.broadcast %49 : vector<2x1xf32> to vector<2x32xf32>
      %52 = arith.mulf %50, %51 : vector<2x32xf32>
      %c0_32 = arith.constant 0 : index
      %c0_33 = arith.constant 0 : index
      %53 = vector.load %arg7[%c0_32, %c0_33] : memref<2x32xf32, #tpu.memory_space<vmem>>, vector<2x32xf32>
      tpu.vector_store %arg7[%c0_32, %c0_33], %52 {strides = array<i32>} : memref<2x32xf32, #tpu.memory_space<vmem>>, vector<2x32xf32>,
    } else {
    }
    return
  }
  func.func @transform_0(%arg0: i32, %arg1: i32) -> (i32, i32, i32) {
    %c0_i32 = arith.constant 0 : i32
    %c0_i32_0 = arith.constant 0 : i32
    return %arg0, %arg1, %c0_i32 : i32, i32, i32
  }
  func.func @transform_1(%arg0: i32, %arg1: i32) -> (i32, i32) {
    %c0_i32 = arith.constant 0 : i32
    %c0_i32_0 = arith.constant 0 : i32
    %c0_i32_1 = arith.constant 0 : i32
    return %c0_i32, %c0_i32_0 : i32, i32
  }
  func.func @transform_2(%arg0: i32, %arg1: i32) -> (i32, i32) {
    %c0_i32 = arith.constant 0 : i32
    %c0_i32_0 = arith.constant 0 : i32
    %c0_i32_1 = arith.constant 0 : i32
    return %c0_i32, %c0_i32_0 : i32, i32
  }
  func.func @transform_3(%arg0: i32, %arg1: i32) -> (i32, i32) {
    %c0_i32 = arith.constant 0 : i32
    %c0_i32_0 = arith.constant 0 : i32
    %c0_i32_1 = arith.constant 0 : i32
    return %c0_i32, %c0_i32_0 : i32, i32
  }
  func.func @transform_4(%arg0: i32, %arg1: i32) -> i32 {
    %c0_i32 = arith.constant 0 : i32
    %c0_i32_0 = arith.constant 0 : i32
    return %c0_i32 : i32
  }
  func.func @transform_5(%arg0: i32, %arg1: i32) -> (i32, i32) {
    %c0_i32 = arith.constant 0 : i32
    %c0_i32_0 = arith.constant 0 : i32
    return %arg0, %c0_i32 : i32, i32
  }
}

</mosaic_0001>

<llo_original>
// kernel: tpu_custom_call.1
$region0: #{tpu_custom_call.1}
  #allocation0 [shape = 'u32[]', space=smem, size = 0x4, offset = 0x4, fixed_abs, tag = 'smem constant byte address 0x4 - core index']
  #allocation1 [shape = 'u32[144,128]{1,0:T(1,128)}', space=vmem, size = 0x12000, scoped, tag = 'internal scratch']
  #allocation2 [shape = 'f32[2,1]{1,0:T(2,128)}', space=vmem, size = 0x400, scoped, tag = 'scratch operand']
  #allocation3 [shape = 'f32[2,1]{1,0:T(2,128)}', space=vmem, size = 0x400, scoped, tag = 'scratch operand']
  #allocation4 [shape = 'f32[2,32]{1,0:T(2,128)}', space=vmem, size = 0x400, scoped, tag = 'scratch operand']
  #allocation5 [shape = 'f32[1]{0:T(128)S(6)}', space=smem, size = 0x200, scoped, tag = 'scoped memory for tpu_custom_call.1']
  %s0 = inlined_call_operand.hbm [shape: f32[2,16,32], index: 0, kind: input, shape index: {}]
  %s1 = inlined_call_operand.hbm [shape: f32[32,32], index: 1, kind: input, shape index: {}]
  %s2 = inlined_call_operand.vmem [shape: f32[1,32], index: 2, kind: input, shape index: {}]
  %s3 = inlined_call_operand.vmem [shape: f32[1,32], index: 3, kind: input, shape index: {}]
  %s4 = inlined_call_operand.<no memory space> [shape: f32[1], index: 4, kind: input, shape index: {}]
  %s5 = inlined_call_operand.hbm [shape: f32[2,32], index: 5, kind: output, shape index: {}]
  %s6 = sld [smem:[#allocation0]]
  $region46: #{tpu_custom_call.1} parent=0
    _
  %s8 = ssub.s32 1, %s6
  %s9 = scalar_select 0, %s8, %s6
  %10 = sst [smem:[#allocation5]] %s4
  $region1: #{tpu_custom_call.1} parent=0
    #allocation6 [shape = 'u8[16384]{0}', space=vmem, size = 0x4000, scoped, tag = 'input window, operand 0, single buffered']
    #allocation7 [shape = 's32[1]{0}', space=sflag, size = 0x4, scoped, tag = 'scoped memory for tpu_custom_call.1']
    #allocation8 [shape = 's32[1]{0}', space=sflag, size = 0x4, scoped, tag = 'scoped memory for tpu_custom_call.1']
    #allocation9 [shape = 'u8[16384]{0}', space=vmem, size = 0x4000, scoped, tag = 'input window, operand 1, single buffered']
    #allocation10 [shape = 's32[1]{0}', space=sflag, size = 0x4, scoped, tag = 'scoped memory for tpu_custom_call.1']
    #allocation11 [shape = 'u8[1024]{0}', space=vmem, size = 0x400, scoped, tag = 'output window, operand 0, single buffered']
    %11 = vsyncpa [#allocation7], 0
    %12 = vsyncpa [#allocation10], 0
    %13 = vsyncpa [#allocation8], 0
    // Predicated region
    $region2: #{tpu_custom_call.1} parent=1 // pred_check
      _
    $region3: #{tpu_custom_call.1} parent=1 // pred_check_branch
      %15 = sbr.rel (0) target = $region5
    $region4: #{tpu_custom_call.1} parent=1 // pred_region
      %s17 = ssub.s32 512, 512
      %18 = vsyncadd [#allocation7], %s17
      %s19 = sshll.u32 [#allocation6], 4
      %s20 = int_to_ptr.vmem [resolvable:$true] %s19
      %25 = dma.hbm_to_vmem [thread:$0]  %s0, 512, %s20, [#allocation7], 128, 128, 8
    $region5: #{tpu_custom_call.1} parent=1 // pred_fallthru
      _
    // Predicated region
    $region6: #{tpu_custom_call.1} parent=1 // pred_check
      _
    $region7: #{tpu_custom_call.1} parent=1 // pred_check_branch
      %27 = sbr.rel (0) target = $region9
    $region8: #{tpu_custom_call.1} parent=1 // pred_region
      %s29 = ssub.s32 512, 512
      %30 = vsyncadd [#allocation10], %s29
      %s31 = sshll.u32 [#allocation9], 4
      %s32 = int_to_ptr.vmem [resolvable:$true] %s31
      %37 = dma.hbm_to_vmem [thread:$0]  %s1, 512, %s32, [#allocation10], 128, 128, 8
    $region9: #{tpu_custom_call.1} parent=1 // pred_fallthru
      _
    // Predicated region
    $region10: #{tpu_custom_call.1} parent=1 // pred_check
      _
    $region11: #{tpu_custom_call.1} parent=1 // pred_check_branch
      %39 = sbr.rel (0) target = $region13
    $region12: #{tpu_custom_call.1} parent=1 // pred_region
      _
    $region13: #{tpu_custom_call.1} parent=1 // pred_fallthru
      _
    // Predicated region
    $region14: #{tpu_custom_call.1} parent=1 // pred_check
      _
    $region15: #{tpu_custom_call.1} parent=1 // pred_check_branch
      %41 = sbr.rel (0) target = $region17
    $region16: #{tpu_custom_call.1} parent=1 // pred_region
      _
    $region17: #{tpu_custom_call.1} parent=1 // pred_fallthru
      _
    // Predicated region
    $region18: #{tpu_custom_call.1} parent=1 // pred_check
      _
    $region19: #{tpu_custom_call.1} parent=1 // pred_check_branch
      %43 = sbr.rel (0) target = $region21
    $region20: #{tpu_custom_call.1} parent=1 // pred_region
      _
    $region21: #{tpu_custom_call.1} parent=1 // pred_fallthru
      _
    // Predicated region
    $region22: #{tpu_custom_call.1} parent=1 // pred_check
      _
    $region23: #{tpu_custom_call.1} parent=1 // pred_check_branch
      %45 = sbr.rel (0) target = $region25
    $region24: #{tpu_custom_call.1} parent=1 // pred_region
      %46 = dma.done [#allocation7], 512
    $region25: #{tpu_custom_call.1} parent=1 // pred_fallthru
      _
    // Predicated region
    $region26: #{tpu_custom_call.1} parent=1 // pred_check
      _
    $region27: #{tpu_custom_call.1} parent=1 // pred_check_branch
      %48 = sbr.rel (0) target = $region29
    $region28: #{tpu_custom_call.1} parent=1 // pred_region
      %49 = dma.done [#allocation10], 512
    $region29: #{tpu_custom_call.1} parent=1 // pred_fallthru
      _
    %p50 = scmp.eq.s32.totalorder 0, 0
    // Predicated region
    $region30: #{tpu_custom_call.1} parent=1 // pred_check
      %p51 = pneg %p50
    $region31: #{tpu_custom_call.1} parent=1 // pred_check_branch
      %53 = sbr.rel (%p51) target = $region33
    $region32: #{tpu_custom_call.1} parent=1 // pred_region
      %vm54 = vcmask 1024
      %55 = vst.msk [vmem:[#allocation2] sm:$0x3] %vm54, -inf
      %56 = vst.msk [vmem:[#allocation3] sm:$0x3] %vm54, 0.0
      %vm57 = vcmask 254976
      %58 = vst.msk [vmem:[#allocation4] sm:$0x3] %vm57, 0.0
    $region33: #{tpu_custom_call.1} parent=1 // pred_fallthru
      _
    %v59 = vld [vmem:[#allocation6] sm:$0xff]
    %v60 = vld [vmem:[#allocation6 + $0x8] sm:$0xff]
    %v61 = vld [vmem:[#allocation6 + $0x10] sm:$0xff]
    %v62 = vld [vmem:[#allocation6 + $0x18] sm:$0xff]
    %v63 = vld [vmem:[#allocation9] sm:$0xff]
    %v64 = vld [vmem:[#allocation9 + $0x8] sm:$0xff]
    %v65 = vld [vmem:[#allocation9 + $0x10] sm:$0xff]
    %v66 = vld [vmem:[#allocation9 + $0x18] sm:$0xff]
    %v67 = vld [vmem:[%s2] sm:$0x1]
    %v69 = vlaneseq
    %v70 = vshrl.u32 %v69, 7
    %v71 = vsub.s32 0, %v70
    %v72 = vrot.slane %v67, %v71
    %vm74 = vcmask 261120
    %v76 = vsel %vm74, %v59, 0
    %v79 = vsel %vm74, %v60, 0
    %v82 = vsel %vm74, %v61, 0
    %v85 = vsel %vm74, %v62, 0
    %87 = vmatprep.subr.mxu0 0.0
    %88 = vmatpush1.msra.mxu0 0.0
    %89 = vmatprep.subr.mxu0 0.0
    %90 = vmatpush1.msra.mxu0 0.0
    %91 = vmatprep.subr.mxu0 0.0
    %92 = vmatpush1.msra.mxu0 0.0
    %93 = vmatprep.subr.mxu0 0.0
    %94 = vmatpush1.msra.mxu0 0.0
    %95 = vmatprep.subr.mxu0 0.0
    %96 = vmatpush1.msra.mxu0 0.0
    %97 = vmatprep.subr.mxu0 0.0
    %98 = vmatpush1.msra.mxu0 0.0
    %99 = vmatprep.subr.mxu0 0.0
    %100 = vmatpush1.msra.mxu0 0.0
    %101 = vmatprep.subr.mxu0 0.0
    %102 = vmatpush1.msra.mxu0 0.0
    %103 = vmatprep.subr.mxu0 0.0
    %104 = vmatpush1.msra.mxu0 0.0
    %105 = vmatprep.subr.mxu0 0.0
    %106 = vmatpush1.msra.mxu0 0.0
    %107 = vmatprep.subr.mxu0 0.0
    %108 = vmatpush1.msra.mxu0 0.0
    %109 = vmatprep.subr.mxu0 0.0
    %110 = vmatpush1.msra.mxu0 0.0
    %111 = vmatprep.subr.mxu0 0.0
    %112 = vmatpush1.msra.mxu0 %v66
    %113 = vmatprep.subr.mxu0 0.0
    %114 = vmatpush1.msra.mxu0 %v65
    %115 = vmatprep.subr.mxu0 0.0
    %116 = vmatpush1.msra.mxu0 %v64
    %117 = vmatprep.subr.mxu0 0.0
    %118 = vmatpush1.msra.mxu0 %v63
    %119 = vmatprep.subr.mxu0 0.0
    %120 = vmatpush2.msra.mxu0 0.0
    %121 = vmatprep.subr.mxu0 0.0
    %122 = vmatpush2.msra.mxu0 0.0
    %123 = vmatprep.subr.mxu0 0.0
    %124 = vmatpush2.msra.mxu0 0.0
    %125 = vmatprep.subr.mxu0 0.0
    %126 = vmatpush2.msra.mxu0 0.0
    %127 = vmatprep.subr.mxu0 0.0
    %128 = vmatpush2.msra.mxu0 0.0
    %129 = vmatprep.subr.mxu0 0.0
    %130 = vmatpush2.msra.mxu0 0.0
    %131 = vmatprep.subr.mxu0 0.0
    %132 = vmatpush2.msra.mxu0 0.0
    %133 = vmatprep.subr.mxu0 0.0
    %134 = vmatpush2.msra.mxu0 0.0
    %135 = vmatprep.subr.mxu0 0.0
    %136 = vmatpush2.msra.mxu0 0.0
    %137 = vmatprep.subr.mxu0 0.0
    %138 = vmatpush2.msra.mxu0 0.0
    %139 = vmatprep.subr.mxu0 0.0
    %140 = vmatpush2.msra.mxu0 0.0
    %141 = vmatprep.subr.mxu0 0.0
    %142 = vmatpush2.msra.mxu0 0.0
    %143 = vmatprep.subr.mxu0 0.0
    %144 = vmatpush2.msra.mxu0 0.0
    %145 = vmatprep.subr.mxu0 0.0
    %146 = vmatpush2.msra.mxu0 0.0
    %147 = vmatprep.subr.mxu0 0.0
    %148 = vmatpush2.msra.mxu0 0.0
    %149 = vmatprep.subr.mxu0 0.0
    %150 = vmatpush2.msra.mxu0 0.0
    %151 = vmatprep.mubr.f32.mxu0 0.0
    %152 = vmatmul.mubr.f32.gmra.mxu0 %v76
    %v153 = vpop.f32.mrf.mxu0
    %v154 = vadd.f32 %v72, %v153
    %v155 = vpop.f32.mrf.mxu0
    %156 = vmatprep.mubr.f32.mxu0 0.0
    %157 = vmatmul.mubr.f32.gmra.mxu0 %v79
    %v158 = vpop.f32.mrf.mxu0
    %v159 = vadd.f32 %v72, %v158
    %v160 = vpop.f32.mrf.mxu0
    %161 = vmatprep.mubr.f32.mxu0 0.0
    %162 = vmatmul.mubr.f32.gmra.mxu0 %v82
    %v163 = vpop.f32.mrf.mxu0
    %v164 = vadd.f32 %v72, %v163
    %v165 = vpop.f32.mrf.mxu0
    %166 = vmatprep.mubr.f32.mxu0 0.0
    %167 = vmatmul.mubr.f32.gmra.mxu0 %v85
    %v168 = vpop.f32.mrf.mxu0
    %v169 = vadd.f32 %v72, %v168
    %v170 = vpop.f32.mrf.mxu0
    %171 = vdwg.mxu0
    %v172 = vtanh.pop %v154
    %v173 = vtanh.pop %v159
    %v174 = vtanh.pop %v164
    %v175 = vtanh.pop %v169
    %v176 = vld [vmem:[%s3] sm:$0x1]
    %v178 = vlaneseq
    %v179 = vshrl.u32 %v178, 7
    %v180 = vsub.s32 0, %v179
    %v181 = vrot.slane %v176, %v180
    %v183 = vmul.f32 %v172, %v181
    %v184 = vmul.f32 %v173, %v181
    %v185 = vmul.f32 %v174, %v181
    %v186 = vmul.f32 %v175, %v181
    %v187 = vsel %vm74, %v183, 0.0
    %188 = vadd.xlane.f32.xlu0 %v187
    %v189 = vpop.xlane.xlu0 %188
    %v190 = vsel %vm74, %v184, 0.0
    %191 = vadd.xlane.f32.xlu0 %v190
    %v192 = vpop.xlane.xlu0 %191
    %v193 = vsel %vm74, %v185, 0.0
    %194 = vadd.xlane.f32.xlu0 %v193
    %v195 = vpop.xlane.xlu0 %194
    %v196 = vsel %vm74, %v186, 0.0
    %197 = vadd.xlane.f32.xlu0 %v196
    %v198 = vpop.xlane.xlu0 %197
    %s199 = sld [smem:[#allocation5]]
    %v200 = vstv %s199
    %v201 = vadd.f32 %v189, %v200
    %v202 = vadd.f32 %v192, %v200
    %v203 = vadd.f32 %v195, %v200
    %v204 = vadd.f32 %v198, %v200
    %v205 = vld [vmem:[#allocation2] sm:$0x3]
    %v210 = vlaneseq
    %v211 = vand.u32 %v210, 127
    %v212 = vlaneseq
    %v213 = vshrl.u32 %v212, 7
    %v214 = vsub.s32 %v211, %v213
    %v215 = vrot.slane %v201, %v214
    %v216 = vadd.s32 %v211, 4294967288
    %v217 = vlaneseq
    %v218 = vshrl.u32 %v217, 7
    %v219 = vsub.s32 %v216, %v218
    %v220 = vrot.slane %v202, %v219
    %vm221 = vcmask 130112
    %v222 = vsel %vm221, %v220, %v215
    %v223 = vlaneseq
    %v224 = vshrl.u32 %v223, 7
    %v225 = vsub.s32 %v211, %v224
    %v226 = vrot.slane %v203, %v225
    %v227 = vlaneseq
    %v228 = vshrl.u32 %v227, 7
    %v229 = vsub.s32 %v216, %v228
    %v230 = vrot.slane %v204, %v229
    %v231 = vsel %vm221, %v230, %v226
    %vm232 = vcmask 1041409
    %v233 = vsel %vm232, %v231, %v222
    %vm235 = vcmask 123904
    %v236 = vsel %vm235, %v233, -inf
    %237 = vmax.xlane.f32.xlu0 %v236
    %v238 = vpop.xlane.xlu0 %237
    %v239 = vmax.f32 %v205, %v238
    %v240 = vsub.f32 %v205, %v239
    %v241 = vmul.f32 %v240, 1.442695
    %v242 = vpow.pop %v241
    %244 = vset.pattern.permute.xlu0 0
    %245 = vperm.xlu0 %244, %v239
    %v246 = vpop.permute.xlu0 %245
    %v247 = vlaneseq
    %v248 = vshrl.u32 %v247, 7
    %v249 = vsub.s32 0, %v248
    %v250 = vrot.slane %v246, %v249
    %v251 = vlaneseq
    %v252 = vshrl.u32 %v251, 7
    %v253 = vsub.s32 1, %v252
    %v254 = vrot.slane %v246, %v253
    %v257 = vsub.f32 %v201, %v250
    %v258 = vsub.f32 %v202, %v250
    %v259 = vsub.f32 %v203, %v254
    %v260 = vsub.f32 %v204, %v254
    %v261 = vmul.f32 %v257, 1.442695
    %v262 = vpow.pop %v261
    %v263 = vmul.f32 %v258, 1.442695
    %v264 = vpow.pop %v263
    %v265 = vmul.f32 %v259, 1.442695
    %v266 = vpow.pop %v265
    %v267 = vmul.f32 %v260, 1.442695
    %v268 = vpow.pop %v267
    %v269 = vld [vmem:[#allocation3] sm:$0x3]
    %v270 = vmul.f32 %v242, %v269
    %275 = vset.pattern.permute.xlu0 0
    %276 = vperm.xlu0 %275, %v262
    %v277 = vpop.permute.xlu0 %276
    %278 = vset.pattern.permute.xlu0 0
    %279 = vperm.xlu0 %278, %v264
    %v280 = vpop.permute.xlu0 %279
    %281 = vset.pattern.permute.xlu0 0
    %282 = vperm.xlu0 %281, %v266
    %v283 = vpop.permute.xlu0 %282
    %284 = vset.pattern.permute.xlu0 0
    %285 = vperm.xlu0 %284, %v268
    %v286 = vpop.permute.xlu0 %285
    %v287 = vlaneseq
    %v288 = vshrl.u32 %v287, 7
    %v289 = vsub.s32 %v211, %v288
    %v290 = vrot.slane %v277, %v289
    %v291 = vlaneseq
    %v292 = vshrl.u32 %v291, 7
    %v293 = vsub.s32 %v216, %v292
    %v294 = vrot.slane %v280, %v293
    %v295 = vsel %vm221, %v294, %v290
    %v296 = vlaneseq
    %v297 = vshrl.u32 %v296, 7
    %v298 = vsub.s32 %v211, %v297
    %v299 = vrot.slane %v283, %v298
    %v300 = vlaneseq
    %v301 = vshrl.u32 %v300, 7
    %v302 = vsub.s32 %v216, %v301
    %v303 = vrot.slane %v286, %v302
    %v304 = vsel %vm221, %v303, %v299
    %v305 = vsel %vm232, %v304, %v295
    %v307 = vsel %vm235, %v305, 0.0
    %308 = vadd.xlane.f32.xlu0 %v307
    %v309 = vpop.xlane.xlu0 %308
    %v310 = vadd.f32 %v270, %v309
    %vm311 = vcmask 1024
    %312 = vst.msk [vmem:[#allocation3] sm:$0x3] %vm311, %v310
    %v317 = vmul.f32 %v59, %v277
    %v318 = vmul.f32 %v60, %v280
    %v319 = vmul.f32 %v61, %v283
    %v320 = vmul.f32 %v62, %v286
    %v321 = vsel %vm74, %v317, 0.0
    %v322 = vsel %vm74, %v318, 0.0
    %v323 = vadd.f32 %v321, %v322
    %v324 = vrot.slane %v323, 4
    %v325 = vadd.f32 %v323, %v324
    %v326 = vrot.slane %v325, 2
    %v327 = vadd.f32 %v325, %v326
    %v328 = vrot.slane %v327, 1
    %v329 = vadd.f32 %v327, %v328
    %v330 = vsel %vm74, %v319, 0.0
    %v331 = vsel %vm74, %v320, 0.0
    %v332 = vadd.f32 %v330, %v331
    %v333 = vrot.slane %v332, 4
    %v334 = vadd.f32 %v332, %v333
    %v335 = vrot.slane %v334, 2
    %v336 = vadd.f32 %v334, %v335
    %v337 = vrot.slane %v336, 1
    %v338 = vadd.f32 %v336, %v337
    %v339 = vld [vmem:[#allocation4] sm:$0x3]
    %341 = vset.pattern.permute.xlu0 0
    %342 = vperm.xlu0 %341, %v242
    %v343 = vpop.permute.xlu0 %342
    %v345 = vmul.f32 %v343, %v339
    %v348 = vsel %vm232, %v338, %v329
    %v350 = vadd.f32 %v345, %v348
    %vm351 = vcmask 254976
    %352 = vst.msk [vmem:[#allocation4] sm:$0x3] %vm351, %v350
    %353 = vst.msk [vmem:[#allocation2] sm:$0x3] %vm311, %v239
    // Predicated region
    $region34: #{tpu_custom_call.1} parent=1 // pred_check
      %p354 = pneg %p50
    $region35: #{tpu_custom_call.1} parent=1 // pred_check_branch
      %356 = sbr.rel (%p354) target = $region37
    $region36: #{tpu_custom_call.1} parent=1 // pred_region
      %v357 = vld [vmem:[#allocation3] sm:$0x3]
      %v358 = vrcp.pop %v357
      %v359 = vld [vmem:[#allocation4] sm:$0x3]
      %361 = vset.pattern.permute.xlu0 0
      %362 = vperm.xlu0 %361, %v358
      %v363 = vpop.permute.xlu0 %362
      %v365 = vmul.f32 %v359, %v363
      %366 = vst.msk [vmem:[#allocation11] sm:$0x3] %vm351, %v365
    $region37: #{tpu_custom_call.1} parent=1 // pred_fallthru
      _
    // Predicated region
    $region38: #{tpu_custom_call.1} parent=1 // pred_check
      _
    $region39: #{tpu_custom_call.1} parent=1 // pred_check_branch
      %368 = sbr.rel (0) target = $region41
    $region40: #{tpu_custom_call.1} parent=1 // pred_region
      %s370 = ssub.s32 32, 32
      %371 = vsyncadd [#allocation8], %s370
      %s373 = sshll.u32 [#allocation11], 4
      %s374 = int_to_ptr.vmem [resolvable:$true] %s373
      %376 = dma.vmem_to_hbm [thread:$0]  %s374, 32, %s5, [#allocation8]
    $region41: #{tpu_custom_call.1} parent=1 // pred_fallthru
      _
    // Predicated region
    $region42: #{tpu_custom_call.1} parent=1 // pred_check
      _
    $region43: #{tpu_custom_call.1} parent=1 // pred_check_branch
      %378 = sbr.rel (0) target = $region45
    $region44: #{tpu_custom_call.1} parent=1 // pred_region
      %379 = dma.done [#allocation8], 32
    $region45: #{tpu_custom_call.1} parent=1 // pred_fallthru
      _
    %380 = vsyncpa [#allocation7], 1
    %381 = vsyncpa [#allocation10], 1
    %382 = vsyncpa [#allocation8], 1

</llo_original>
